<compile_context>
chip_gen: v6e
topology: v6e:2x2x1
jax: 0.10.0
libtpu: 0.0.40
codegen_flags: <defaults>
</compile_context>

<pallas_src>
import jax
import jax.numpy as jnp
from jax import lax
from jax.experimental import pallas as pl
from jax.experimental.pallas import tpu as pltpu


def _vq_softmax_kernel(z_ref, et_ref, esq_ref, o_ref):
    """One (batch, spatial-tile) grid step.

    z_ref:   (1, C, hw_tile)        tokens, channels-major
    et_ref:  (C, n_e_pad)           codebook transposed (grid-invariant)
    esq_ref: (1, n_e_pad) f32       per-code squared norms (padded codes = 1e30)
    o_ref:   (1, hw_tile, n_e_pad)  softmax over codes
    """
    z = z_ref[0]                                               # (C, hw_tile)

    # Cross term z^T @ E^T on the MXU (transposed-LHS matmul, f32 accumulation).
    cross = lax.dot_general(
        z.astype(et_ref.dtype), et_ref[...],
        dimension_numbers=(((0,), (0,)), ((), ())),
        preferred_element_type=jnp.float32)                    # (hw_tile, n_e_pad)

    # ||z||^2 is constant along the code axis -> cancels in the softmax; drop it.
    d = esq_ref[...] - 2.0 * cross                             # (hw_tile, n_e_pad)

    # softmax(max(d_full) - d_full) == softmax(-d_full) == softmax(d_min - d).
    d_min = jnp.min(d, axis=-1, keepdims=True)
    p = jnp.exp(d_min - d)
    denom = jnp.sum(p, axis=-1, keepdims=True)
    o_ref[0] = (p / denom).astype(o_ref.dtype)                 # exact divide


def vector_quantizer_d(z_nchw, embedding, *, token_tile=None,
                       cross_dtype=jnp.bfloat16, out_dtype=jnp.float32):
    """Pallas VectorQuantizerD forward.

    z_nchw:    (B, C, H, W) float32/bfloat16
    embedding: (n_e, C)     float32 codebook
    returns:   (B*H*W, n_e) `out_dtype` softmax over codebook distances
    """
    B, C, H, W = z_nchw.shape
    n_e, e_dim = embedding.shape
    assert C == e_dim, "channel dim must equal the codebook embedding dim"
    hw = H * W

    # --- codebook: transpose, cast, pad the code axis to a multiple of 256.
    n_e_pad = ((n_e + 255) // 256) * 256
    e_t = jnp.transpose(embedding).astype(cross_dtype)           # (C, n_e)
    e_sq = jnp.sum(embedding.astype(jnp.float32) ** 2, axis=1)   # exact f32
    if n_e_pad != n_e:
        e_t = jnp.pad(e_t, ((0, 0), (0, n_e_pad - n_e)))
        e_sq = jnp.pad(e_sq, (0, n_e_pad - n_e), constant_values=1e30)
    e_sq = e_sq[None, :]                                         # (1, n_e_pad)

    # --- tokens: z is already channels-major; (B, C, H, W) -> (B, C, H*W) is free.
    z3 = z_nchw.reshape(B, C, hw)
    hw_pad = ((hw + 127) // 128) * 128
    if hw_pad != hw:
        # Padded (all-zero) tokens produce valid finite softmax rows that are
        # sliced off below -- do not "optimize" the slice away.
        z3 = jnp.pad(z3, ((0, 0), (0, 0), (0, hw_pad - hw)))

    # --- spatial tile: largest multiple of 128 dividing hw_pad, capped so the
    # double-buffered (tile, n_e_pad) f32 output block stays inside VMEM.
    if token_tile is None:
        token_tile = 1024 if n_e_pad <= 2048 else (512 if n_e_pad <= 8192 else 256)
    hw_tile, t = 128, 128
    while t <= min(hw_pad, max(token_tile, 128)):
        if hw_pad % t == 0:
            hw_tile = t
        t += 128
    n_j = hw_pad // hw_tile

    # --- generation-aware scoped-VMEM budget (~75% of physical capacity).
    try:
        vmem_limit = int(pltpu.get_tpu_info().vmem_capacity_bytes) * 3 // 4
    except Exception:
        vmem_limit = 48 * 1024 * 1024   # conservative, valid on all generations

    def _invariant_spec(shape):
        idx = lambda b, j: (0,) * len(shape)
        try:  # single-buffer grid-invariant blocks (VMEM headroom, esp. v7x)
            return pl.BlockSpec(shape, idx, pipeline_mode=pl.Buffered(1))
        except (TypeError, AttributeError):
            return pl.BlockSpec(shape, idx)

    out = pl.pallas_call(
        _vq_softmax_kernel,
        out_shape=jax.ShapeDtypeStruct((B, hw_pad, n_e_pad), out_dtype),
        grid_spec=pltpu.PrefetchScalarGridSpec(
            num_scalar_prefetch=0,
            grid=(B, n_j),
            in_specs=[
                pl.BlockSpec((1, C, hw_tile), lambda b, j: (b, 0, j)),  # tokens
                _invariant_spec((C, n_e_pad)),                          # codebook
                _invariant_spec((1, n_e_pad)),                          # code norms
            ],
            out_specs=pl.BlockSpec((1, hw_tile, n_e_pad), lambda b, j: (b, j, 0)),
        ),
        compiler_params=pltpu.CompilerParams(
            dimension_semantics=("parallel", "parallel"),
            vmem_limit_bytes=vmem_limit,
        ),
    )(z3, e_t, e_sq)

    if hw_pad != hw:                       # only when H*W is not 128-aligned
        out = out[:, :hw, :]
    out = out.reshape(B * hw, n_e_pad)     # free when no padding was applied
    if n_e_pad != n_e:                     # only when n_e is not a mult. of 256
        out = out[:, :n_e]
    return out


def vector_quantizer_d_reference(z, embedding):
    """Pure-JAX reference mirroring the PyTorch forward."""
    B, C, H, W = z.shape
    zf = jnp.transpose(z, (0, 2, 3, 1)).reshape(-1, C)
    d = (jnp.sum(zf ** 2, axis=1, keepdims=True)
         + jnp.sum(embedding ** 2, axis=1)
         - 2.0 * (zf @ embedding.T))
    nd = jnp.max(d, axis=1, keepdims=True) - d
    return jax.nn.softmax(nd, axis=1)


if __name__ == "__main__":
    # Small shapes consistent with the module: B=2, e_dim(C)=64, 16x16 spatial,
    # n_e=256 codes -> 512 tokens; H*W=256 so no padding / slicing path is hit.
    B, C, H, W = 2, 64, 16, 16
    n_e = 256

    key = jax.random.PRNGKey(0)
    kz, ke = jax.random.split(key)
    z = jax.random.normal(kz, (B, C, H, W), jnp.float32)
    # torch: embedding.weight.data.uniform_(-1/n_e, 1/n_e)
    embedding = jax.random.uniform(ke, (n_e, C), jnp.float32,
                                   -1.0 / n_e, 1.0 / n_e)

    y = jax.block_until_ready(vector_quantizer_d(z, embedding))
    y_ref = vector_quantizer_d_reference(z, embedding)

    assert y.shape == (B * H * W, n_e), y.shape
    max_err = float(jnp.max(jnp.abs(y - y_ref)))
    assert jnp.allclose(y, y_ref, atol=1e-4, rtol=1e-4), max_err
    print("KERNEL_OK")
</pallas_src>

<mosaic_0001>
module attributes {stable_mosaic.version = 11 : i64} {
  func.func @_vq_softmax_kernel(%arg0: i32, %arg1: i32, %arg2: memref<1x64x256xf32, #tpu.memory_space<vmem>>, %arg3: memref<64x256xbf16, #tpu.memory_space<vmem>>, %arg4: memref<1x256xf32, #tpu.memory_space<vmem>>, %arg5: memref<1x256x256xf32, #tpu.memory_space<vmem>>) attributes {dimension_semantics = [#tpu.dimension_semantics<parallel>, #tpu.dimension_semantics<parallel>], iteration_bounds = array<i64: 2, 1>, scalar_prefetch = 0 : i64, scratch_operands = 0 : i64, tpu.core_type = #tpu.core_type<tc>, window_params = [{transform_indices = @transform_0, window_bounds = array<i64: 1, 64, 256>}, {pipeline_mode = #tpu.pipeline_mode<synchronous>, transform_indices = @transform_1, window_bounds = array<i64: 64, 256>}, {pipeline_mode = #tpu.pipeline_mode<synchronous>, transform_indices = @transform_2, window_bounds = array<i64: 1, 256>}, {transform_indices = @transform_3, window_bounds = array<i64: 1, 256, 256>}]} {
    %c0 = arith.constant 0 : index
    %c0_0 = arith.constant 0 : index
    %c0_1 = arith.constant 0 : index
    %0 = vector.load %arg2[%c0, %c0_0, %c0_1] : memref<1x64x256xf32, #tpu.memory_space<vmem>>, vector<1x64x256xf32>
    %1 = vector.shape_cast %0 : vector<1x64x256xf32> to vector<64x256xf32>
    %2 = arith.truncf %1 : vector<64x256xf32> to vector<64x256xbf16>
    %c0_2 = arith.constant 0 : index
    %c0_3 = arith.constant 0 : index
    %3 = vector.load %arg3[%c0_2, %c0_3] : memref<64x256xbf16, #tpu.memory_space<vmem>>, vector<64x256xbf16>
    %cst = arith.constant dense<0.000000e+00> : vector<256x256xf32>
    %4 = tpu.matmul %2, %3, %cst {dimension_numbers = #tpu.dot_dimension_numbers<[0], [0], [1], [1], [0, 1, 1, 1], [], []>} : vector<64x256xbf16>, vector<64x256xbf16>, vector<256x256xf32> -> vector<256x256xf32>
    %c0_4 = arith.constant 0 : index
    %c0_5 = arith.constant 0 : index
    %5 = vector.load %arg4[%c0_4, %c0_5] : memref<1x256xf32, #tpu.memory_space<vmem>>, vector<1x256xf32>
    %cst_6 = arith.constant 2.000000e+00 : f32
    %6 = vector.broadcast %cst_6 : f32 to vector<256x256xf32>
    %7 = arith.mulf %6, %4 : vector<256x256xf32>
    %8 = vector.broadcast %5 : vector<1x256xf32> to vector<256x256xf32>
    %9 = arith.subf %8, %7 : vector<256x256xf32>
    %cst_7 = arith.constant dense<0x7F800000> : vector<256xf32>
    %10 = vector.multi_reduction <minimumf>, %9, %cst_7 [1] : vector<256x256xf32> to vector<256xf32>
    %11 = vector.shape_cast %10 : vector<256xf32> to vector<256x1xf32>
    %12 = vector.broadcast %11 : vector<256x1xf32> to vector<256x256xf32>
    %13 = arith.subf %12, %9 : vector<256x256xf32>
    %14 = math.exp %13 : vector<256x256xf32>
    %cst_8 = arith.constant dense<0.000000e+00> : vector<256xf32>
    %15 = vector.multi_reduction <add>, %14, %cst_8 [1] : vector<256x256xf32> to vector<256xf32>
    %16 = vector.shape_cast %15 : vector<256xf32> to vector<256x1xf32>
    %17 = vector.broadcast %16 : vector<256x1xf32> to vector<256x256xf32>
    %18 = arith.divf %14, %17 : vector<256x256xf32>
    %c0_9 = arith.constant 0 : index
    %c0_10 = arith.constant 0 : index
    %c0_11 = arith.constant 0 : index
    %19 = vector.load %arg5[%c0_9, %c0_10, %c0_11] : memref<1x256x256xf32, #tpu.memory_space<vmem>>, vector<1x256x256xf32>
    %20 = vector.shape_cast %19 : vector<1x256x256xf32> to vector<256x256xf32>
    %21 = vector.shape_cast %18 : vector<256x256xf32> to vector<1x256x256xf32>
    tpu.vector_store %arg5[%c0_9, %c0_10, %c0_11], %21 {strides = array<i32>} : memref<1x256x256xf32, #tpu.memory_space<vmem>>, vector<1x256x256xf32>,
    return
  }
  func.func @transform_0(%arg0: i32, %arg1: i32) -> (i32, i32, i32) {
    %c0_i32 = arith.constant 0 : i32
    %c0_i32_0 = arith.constant 0 : i32
    return %arg0, %c0_i32, %arg1 : i32, i32, i32
  }
  func.func @transform_1(%arg0: i32, %arg1: i32) -> (i32, i32) {
    %c0_i32 = arith.constant 0 : i32
    %c0_i32_0 = arith.constant 0 : i32
    %c0_i32_1 = arith.constant 0 : i32
    return %c0_i32, %c0_i32_0 : i32, i32
  }
  func.func @transform_2(%arg0: i32, %arg1: i32) -> (i32, i32) {
    %c0_i32 = arith.constant 0 : i32
    %c0_i32_0 = arith.constant 0 : i32
    %c0_i32_1 = arith.constant 0 : i32
    return %c0_i32, %c0_i32_0 : i32, i32
  }
  func.func @transform_3(%arg0: i32, %arg1: i32) -> (i32, i32, i32) {
    %c0_i32 = arith.constant 0 : i32
    %c0_i32_0 = arith.constant 0 : i32
    return %arg0, %arg1, %c0_i32 : i32, i32, i32
  }
}

</mosaic_0001>

<llo_original>
// kernel: tpu_custom_call.1
$region0: #{tpu_custom_call.1}
  #allocation0 [shape = 'u32[]', space=smem, size = 0x4, offset = 0x4, fixed_abs, tag = 'smem constant byte address 0x4 - core index']
  #allocation1 [shape = 'u32[144,128]{1,0:T(1,128)}', space=vmem, size = 0x12000, scoped, tag = 'internal scratch']
  %s0 = inlined_call_operand.hbm [shape: f32[2,64,256], index: 0, kind: input, shape index: {}]
  %s1 = inlined_call_operand.hbm [shape: bf16[64,256], index: 1, kind: input, shape index: {}]
  %s2 = inlined_call_operand.vmem [shape: f32[1,256], index: 2, kind: input, shape index: {}]
  %s3 = inlined_call_operand.hbm [shape: f32[2,256,256], index: 3, kind: output, shape index: {}]
  %s4 = sld [smem:[#allocation0]]
  $region53: #{tpu_custom_call.1} parent=0
    _
  %s6 = ssub.s32 1, %s4
  %s7 = scalar_select 0, %s6, %s4
  $region1: #{tpu_custom_call.1} parent=0
    #allocation2 [shape = 'u8[131072]{0}', space=vmem, size = 0x20000, scoped, tag = 'input window, operand 0']
    #allocation3 [shape = 's32[2]{0}', space=sflag, size = 0x8, scoped, tag = 'scoped memory for tpu_custom_call.1']
    #allocation4 [shape = 's32[2]{0}', space=sflag, size = 0x8, scoped, tag = 'scoped memory for tpu_custom_call.1']
    #allocation5 [shape = 'u8[32768]{0}', space=vmem, size = 0x8000, scoped, tag = 'input window, operand 1, single buffered']
    #allocation6 [shape = 's32[1]{0}', space=sflag, size = 0x4, scoped, tag = 'scoped memory for tpu_custom_call.1']
    #allocation7 [shape = 'u8[524288]{0}', space=vmem, size = 0x80000, scoped, tag = 'output window, operand 0']
    %8 = vsyncpa [#allocation3], 0
    %s9 = scalar_lea.sflag [#allocation3], 1
    %10 = vsyncpa %s9, 0
    %11 = vsyncpa [#allocation6], 0
    %12 = vsyncpa [#allocation4], 0
    %s13 = scalar_lea.sflag [#allocation4], 1
    %14 = vsyncpa %s13, 0
    loop: start=0, step=1, limit=4
    $region2: #{tpu_custom_call.1} parent=1 // loop_pre_header
      _
    $region3: #{tpu_custom_call.1} parent=1 // loop_header
      %s16 = sphi 0, %s20
      %p17 = scmp.ge.s32.totalorder %s16, 4
      %s23 = sphi 0, %s35
      %s24 = sphi 0, %s31
      %s25 = sphi 0, %s23
      %s26 = sphi 0, %s24
      %s27 = sphi 0, %s25
      %s28 = sphi 0, %s26
      %s40 = sphi 0, %s42
      %s43 = sphi 0, %s40
      %s44 = sphi 0, %s43
      %s60 = sphi 0, %s44
      %s64 = sphi 0, %s64
      %s66 = sphi 0, %s64
      %s67 = sphi 0, %s66
      %s81 = sphi 0, %s67
      %s85 = sphi 0, %s85
      %s87 = sphi 0, %s85
      %s88 = sphi 0, %s87
      %s102 = sphi 0, %s88
      %s110 = sphi 0, %s112
      %s113 = sphi 0, %s110
      %s114 = sphi 0, %s113
      %s130 = sphi 0, %s114
    $region4: #{tpu_custom_call.1} parent=1 // loop_header_branch
      %19 = sbr.rel (%p17) target = $region8
    $region5: #{tpu_custom_call.1} parent=1 // loop_body
      %s21 = ssub.s32 %s16, 1
      %s22 = ssub.s32 %s16, 2
      %s29 = sadd.s32 1, %s24
      %p30 = scmp.ge.s32.totalorder %s29, 1
      %s31 = scalar_select %p30, 0, %s29
      %s32 = sadd.s32 1, %s23
      %s33 = scalar_select %p30, %s32, %s23
      %p34 = scmp.ge.s32.totalorder %s33, 2
      %s35 = scalar_select %p34, 0, %s33
      %s36 = ssub.s32 %s23, %s35
      %s37 = ssub.s32 %s24, %s31
      %s38 = sor.u32 %s36, %s37
      %p39 = scmp.eq.s32.totalorder %s38, 0
      %s41 = sadd.s32 %s40, 1
      %s42 = scalar_select %p39, %s40, %s41
      %p45 = pneg %p39
      %p46 = scmp.eq.s32.totalorder %s16, 1
      %p47 = por %p45, %p46
      %p48 = scmp.ne.s32.totalorder %s40, %s43
      %p49 = scmp.eq.s32.totalorder %s16, 0
      %p50 = por %p48, %p49
      %p51 = scmp.ne.s32.totalorder %s40, %s43
      %p52 = scmp.eq.s32.totalorder %s21, 1
      %p53 = por %p51, %p52
      %p54 = scmp.ne.s32.totalorder %s43, %s44
      %p55 = scmp.eq.s32.totalorder %s21, 0
      %p56 = por %p54, %p55
      %p57 = scmp.ne.s32.totalorder %s43, %s44
      %p58 = scmp.eq.s32.totalorder %s22, 1
      %p59 = por %p57, %p58
      %p61 = scmp.ne.s32.totalorder %s44, %s60
      %p62 = scmp.eq.s32.totalorder %s22, 0
      %p63 = por %p61, %p62
      %s65 = sadd.s32 %s64, 1
      %p68 = scmp.eq.s32.totalorder %s16, 1
      %p69 = scmp.ne.s32.totalorder %s64, %s66
      %p70 = scmp.eq.s32.totalorder %s16, 0
      %p71 = por %p69, %p70
      %p72 = scmp.ne.s32.totalorder %s64, %s66
      %p73 = scmp.eq.s32.totalorder %s21, 1
      %p74 = por %p72, %p73
      %p75 = scmp.ne.s32.totalorder %s66, %s67
      %p76 = scmp.eq.s32.totalorder %s21, 0
      %p77 = por %p75, %p76
      %p78 = scmp.ne.s32.totalorder %s66, %s67
      %p79 = scmp.eq.s32.totalorder %s22, 1
      %p80 = por %p78, %p79
      %p82 = scmp.ne.s32.totalorder %s67, %s81
      %p83 = scmp.eq.s32.totalorder %s22, 0
      %p84 = por %p82, %p83
      %s86 = sadd.s32 %s85, 1
      %p89 = scmp.eq.s32.totalorder %s16, 1
      %p90 = scmp.ne.s32.totalorder %s85, %s87
      %p91 = scmp.eq.s32.totalorder %s16, 0
      %p92 = por %p90, %p91
      %p93 = scmp.ne.s32.totalorder %s85, %s87
      %p94 = scmp.eq.s32.totalorder %s21, 1
      %p95 = por %p93, %p94
      %p96 = scmp.ne.s32.totalorder %s87, %s88
      %p97 = scmp.eq.s32.totalorder %s21, 0
      %p98 = por %p96, %p97
      %p99 = scmp.ne.s32.totalorder %s87, %s88
      %p100 = scmp.eq.s32.totalorder %s22, 1
      %p101 = por %p99, %p100
      %p103 = scmp.ne.s32.totalorder %s88, %s102
      %p104 = scmp.eq.s32.totalorder %s22, 0
      %p105 = por %p103, %p104
      %s106 = ssub.s32 %s23, %s35
      %s107 = ssub.s32 %s24, %s31
      %s108 = sor.u32 %s106, %s107
      %p109 = scmp.eq.s32.totalorder %s108, 0
      %s111 = sadd.s32 %s110, 1
      %s112 = scalar_select %p109, %s110, %s111
      %p115 = pneg %p109
      %p116 = scmp.eq.s32.totalorder %s16, 1
      %p117 = por %p115, %p116
      %p118 = scmp.ne.s32.totalorder %s110, %s113
      %p119 = scmp.eq.s32.totalorder %s16, 0
      %p120 = por %p118, %p119
      %p121 = scmp.ne.s32.totalorder %s110, %s113
      %p122 = scmp.eq.s32.totalorder %s21, 1
      %p123 = por %p121, %p122
      %p124 = scmp.ne.s32.totalorder %s113, %s114
      %p125 = scmp.eq.s32.totalorder %s21, 0
      %p126 = por %p124, %p125
      %p127 = scmp.ne.s32.totalorder %s113, %s114
      %p128 = scmp.eq.s32.totalorder %s22, 1
      %p129 = por %p127, %p128
      %p131 = scmp.ne.s32.totalorder %s114, %s130
      %p132 = scmp.eq.s32.totalorder %s22, 0
      %p133 = por %p131, %p132
      %p134 = scmp.le.s32.totalorder 1, %s16
      %p135 = scmp.lt.s32.totalorder %s16, 3
      %p136 = pnand %p134, %p135
      %p137 = pneg %p136
      // Predicated region
      $region9: #{tpu_custom_call.1} parent=5 // pred_check
        _
      $region10: #{tpu_custom_call.1} parent=5 // pred_check_branch
        %139 = sbr.rel (%p136) target = $region12
      $region11: #{tpu_custom_call.1} parent=5 // pred_region
        %s140 = ssub.s32 %s16, 1
        // Predicated region
        $region13: #{tpu_custom_call.1} parent=11 // pred_check
          %p141 = pneg %p77
        $region14: #{tpu_custom_call.1} parent=11 // pred_check_branch
          %143 = sbr.rel (%p141) target = $region16
        $region15: #{tpu_custom_call.1} parent=11 // pred_region
          %s145 = ssub.s32 1024, 1024
          %146 = vsyncadd [#allocation6], %s145
          %s147 = sshll.u32 [#allocation5], 4
          %s148 = int_to_ptr.vmem [resolvable:$true] %s147
          %153 = dma.hbm_to_vmem [thread:$0]  %s1, 1024, %s148, [#allocation6], 128, 128, 8
        $region16: #{tpu_custom_call.1} parent=11 // pred_fallthru
          _
        // Predicated region
        $region17: #{tpu_custom_call.1} parent=11 // pred_check
          %p154 = pneg %p98
        $region18: #{tpu_custom_call.1} parent=11 // pred_check_branch
          %156 = sbr.rel (%p154) target = $region20
        $region19: #{tpu_custom_call.1} parent=11 // pred_region
          _
        $region20: #{tpu_custom_call.1} parent=11 // pred_fallthru
          _
      $region12: #{tpu_custom_call.1} parent=5 // pred_fallthru
        _
      %p157 = scmp.lt.s32.totalorder %s16, 2
      // Predicated region
      $region21: #{tpu_custom_call.1} parent=5 // pred_check
        %p158 = pneg %p157
      $region22: #{tpu_custom_call.1} parent=5 // pred_check_branch
        %160 = sbr.rel (%p158) target = $region24
      $region23: #{tpu_custom_call.1} parent=5 // pred_region
        // Predicated region
        $region25: #{tpu_custom_call.1} parent=23 // pred_check
          %p161 = pneg %p50
        $region26: #{tpu_custom_call.1} parent=23 // pred_check_branch
          %163 = sbr.rel (%p161) target = $region28
        $region27: #{tpu_custom_call.1} parent=23 // pred_region
          %s164 = sand.u32 %s40, 1
          %s165 = scalar_lea.sflag [#allocation3], %s164
          %s166 = sand.u32 %s40, 1
          %s167 = smul.addr %s166, 128
          %s168 = scalar_lea.vmem [#allocation2], %s167
          %s169 = smul.u32 2, %s24
          %s171 = ssub.s32 2048, 2048
          %172 = vsyncadd %s165, %s171
          %s173 = smul.addr %s23, 16
          %s174 = sadd.s32 %s169, %s173
          %s175 = smul.addr %s174, 128
          %s176 = scalar_lea.hbm %s0, %s175
          %s177 = sshll.u32 %s168, 4
          %s178 = int_to_ptr.vmem [resolvable:$true] %s177
          %183 = dma.hbm_to_vmem [thread:$0]  %s176, 2048, %s178, %s165, 256, 256, 16
        $region28: #{tpu_custom_call.1} parent=23 // pred_fallthru
          _
      $region24: #{tpu_custom_call.1} parent=5 // pred_fallthru
        _
      %p184 = scmp.le.s32.totalorder 1, %s16
      %p185 = scmp.lt.s32.totalorder %s16, 3
      %p186 = pnand %p184, %p185
      %p187 = pneg %p186
      // Predicated region
      $region29: #{tpu_custom_call.1} parent=5 // pred_check
        _
      $region30: #{tpu_custom_call.1} parent=5 // pred_check_branch
        %189 = sbr.rel (%p186) target = $region32
      $region31: #{tpu_custom_call.1} parent=5 // pred_region
        %s190 = ssub.s32 %s16, 1
        %s191 = sand.u32 %s43, 1
        %s192 = scalar_lea.sflag [#allocation3], %s191
        %s193 = sand.u32 %s43, 1
        %s194 = smul.addr %s193, 128
        %s195 = scalar_lea.vmem [#allocation2], %s194
        // Predicated region
        $region33: #{tpu_custom_call.1} parent=31 // pred_check
          %p196 = pneg %p56
        $region34: #{tpu_custom_call.1} parent=31 // pred_check_branch
          %198 = sbr.rel (%p196) target = $region36
        $region35: #{tpu_custom_call.1} parent=31 // pred_region
          %199 = dma.done %s192, 2048
        $region36: #{tpu_custom_call.1} parent=31 // pred_fallthru
          _
        // Predicated region
        $region37: #{tpu_custom_call.1} parent=31 // pred_check
          %p200 = pneg %p77
        $region38: #{tpu_custom_call.1} parent=31 // pred_check_branch
          %202 = sbr.rel (%p200) target = $region40
        $region39: #{tpu_custom_call.1} parent=31 // pred_region
          %203 = dma.done [#allocation6], 1024
        $region40: #{tpu_custom_call.1} parent=31 // pred_fallthru
          _
        %s204 = sand.u32 %s43, 1
        %s205 = scalar_lea.sflag [#allocation3], %s204
        %s206 = sand.u32 %s43, 1
        %s207 = smul.addr %s206, 128
        %s208 = scalar_lea.vmem [#allocation2], %s207
        %p209 = pneg %p56
        %p210 = pneg %p53
        %p211 = pneg %p77
        %p212 = pneg %p74
        %p213 = pneg %p98
        %p214 = pneg %p95
        %p215 = pneg %p126
        %p216 = pneg %p123
        %s217 = sand.u32 %s113, 1
        %s218 = scalar_lea.sflag [#allocation4], %s217
        %s219 = sand.u32 %s113, 1
        %s220 = smul.addr %s219, 512
        %s221 = scalar_lea.vmem [#allocation7], %s220
        %s222 = smul.u32 2, %s26
        %s223 = smul.u32 32, %s26
        %v225 = vld [vmem:[%s195] sm:$0xff]
        %v226 = vld [vmem:[%s195 + $0x8] sm:$0xff]
        %v227 = vld [vmem:[%s195 + $0x10] sm:$0xff]
        %v228 = vld [vmem:[%s195 + $0x18] sm:$0xff]
        %v229 = vld [vmem:[%s195 + $0x20] sm:$0xff]
        %v230 = vld [vmem:[%s195 + $0x28] sm:$0xff]
        %v231 = vld [vmem:[%s195 + $0x30] sm:$0xff]
        %v232 = vld [vmem:[%s195 + $0x38] sm:$0xff]
        %v233 = vld [vmem:[%s195 + $0x40] sm:$0xff]
        %v234 = vld [vmem:[%s195 + $0x48] sm:$0xff]
        %v235 = vld [vmem:[%s195 + $0x50] sm:$0xff]
        %v236 = vld [vmem:[%s195 + $0x58] sm:$0xff]
        %v237 = vld [vmem:[%s195 + $0x60] sm:$0xff]
        %v238 = vld [vmem:[%s195 + $0x68] sm:$0xff]
        %v239 = vld [vmem:[%s195 + $0x70] sm:$0xff]
        %v240 = vld [vmem:[%s195 + $0x78] sm:$0xff]
        %v241 = vpack.c.bf16 %v227, %v225
        %v242 = vpack.c.bf16 %v228, %v226
        %v243 = vpack.c.bf16 %v231, %v229
        %v244 = vpack.c.bf16 %v232, %v230
        %v245 = vpack.c.bf16 %v235, %v233
        %v246 = vpack.c.bf16 %v236, %v234
        %v247 = vpack.c.bf16 %v239, %v237
        %v248 = vpack.c.bf16 %v240, %v238
        %v249 = vld [vmem:[#allocation5] sm:$0xff]
        %v250 = vld [vmem:[#allocation5 + $0x8] sm:$0xff]
        %v251 = vld [vmem:[#allocation5 + $0x10] sm:$0xff]
        %v252 = vld [vmem:[#allocation5 + $0x18] sm:$0xff]
        %v253 = vld [vmem:[#allocation5 + $0x20] sm:$0xff]
        %v254 = vld [vmem:[#allocation5 + $0x28] sm:$0xff]
        %v255 = vld [vmem:[#allocation5 + $0x30] sm:$0xff]
        %v256 = vld [vmem:[#allocation5 + $0x38] sm:$0xff]
        %257 = vxpose.xlu0.c.b16.start [1/8] %v241, 128
        %258 = vxpose.xlu0.c.b16.cont [2/8] %v243, 128
        %259 = vxpose.xlu0.c.b16.cont [3/8] %v245, 128
        %260 = vxpose.xlu0.c.b16.cont [4/8] %v247, 128
        %261 = vxpose.xlu0.c.b16.cont [5/8] 0, 128
        %262 = vxpose.xlu0.c.b16.cont [6/8] 0, 128
        %263 = vxpose.xlu0.c.b16.cont [7/8] 0, 128
        %264 = vxpose.xlu0.c.b16.end [8/8] 0, 128
        %v265 = vpop.trf.xlu0
        %v266 = vpop.trf.xlu0
        %v267 = vpop.trf.xlu0
        %v268 = vpop.trf.xlu0
        %v269 = vpop.trf.xlu0
        %v270 = vpop.trf.xlu0
        %v271 = vpop.trf.xlu0
        %v272 = vpop.trf.xlu0
        %273 = vxpose.xlu0.c.b16.start [1/8] %v242, 128
        %274 = vxpose.xlu0.c.b16.cont [2/8] %v244, 128
        %275 = vxpose.xlu0.c.b16.cont [3/8] %v246, 128
        %276 = vxpose.xlu0.c.b16.cont [4/8] %v248, 128
        %277 = vxpose.xlu0.c.b16.cont [5/8] 0, 128
        %278 = vxpose.xlu0.c.b16.cont [6/8] 0, 128
        %279 = vxpose.xlu0.c.b16.cont [7/8] 0, 128
        %280 = vxpose.xlu0.c.b16.end [8/8] 0, 128
        %v281 = vpop.trf.xlu0
        %v282 = vpop.trf.xlu0
        %v283 = vpop.trf.xlu0
        %v284 = vpop.trf.xlu0
        %v285 = vpop.trf.xlu0
        %v286 = vpop.trf.xlu0
        %v287 = vpop.trf.xlu0
        %v288 = vpop.trf.xlu0
        %v297 = vunpack.c.l.b16 %v249
        %v298 = vunpack.c.h.b16 %v249
        %v299 = vunpack.c.l.b16 %v250
        %v300 = vunpack.c.h.b16 %v250
        %v301 = vunpack.c.l.b16 %v251
        %v302 = vunpack.c.h.b16 %v251
        %v303 = vunpack.c.l.b16 %v252
        %v304 = vunpack.c.h.b16 %v252
        %v305 = vunpack.c.l.b16 %v253
        %v306 = vunpack.c.h.b16 %v253
        %v307 = vunpack.c.l.b16 %v254
        %v308 = vunpack.c.h.b16 %v254
        %v309 = vunpack.c.l.b16 %v255
        %v310 = vunpack.c.h.b16 %v255
        %v311 = vunpack.c.l.b16 %v256
        %v312 = vunpack.c.h.b16 %v256
        %v313 = vpack.c.b16 %v299, %v297
        %v314 = vpack.c.b16 %v300, %v298
        %v315 = vpack.c.b16 %v303, %v301
        %v316 = vpack.c.b16 %v304, %v302
        %v317 = vpack.c.b16 %v307, %v305
        %v318 = vpack.c.b16 %v308, %v306
        %v319 = vpack.c.b16 %v311, %v309
        %v320 = vpack.c.b16 %v312, %v310
        %vm329 = vcmask 523264
        %v331 = vsel %vm329, %v265, 0
        %v334 = vsel %vm329, %v266, 0
        %v337 = vsel %vm329, %v267, 0
        %v340 = vsel %vm329, %v268, 0
        %v343 = vsel %vm329, %v269, 0
        %v346 = vsel %vm329, %v270, 0
        %v349 = vsel %vm329, %v271, 0
        %v352 = vsel %vm329, %v272, 0
        %v355 = vsel %vm329, %v281, 0
        %v358 = vsel %vm329, %v282, 0
        %v361 = vsel %vm329, %v283, 0
        %v364 = vsel %vm329, %v284, 0
        %v367 = vsel %vm329, %v285, 0
        %v370 = vsel %vm329, %v286, 0
        %v373 = vsel %vm329, %v287, 0
        %v376 = vsel %vm329, %v288, 0
        %378 = vmatprep.subr.bf16.mxu0 0
        %379 = vmatpush1.bf16.msra.mxu0 0
        %380 = vmatprep.subr.bf16.mxu0 0
        %381 = vmatpush1.bf16.msra.mxu0 0
        %382 = vmatprep.subr.bf16.mxu0 0
        %383 = vmatpush1.bf16.msra.mxu0 0
        %384 = vmatprep.subr.bf16.mxu0 0
        %385 = vmatpush1.bf16.msra.mxu0 0
        %386 = vmatprep.subr.bf16.mxu0 %v320
        %387 = vmatpush1.bf16.msra.mxu0 %v319
        %388 = vmatprep.subr.bf16.mxu0 %v318
        %389 = vmatpush1.bf16.msra.mxu0 %v317
        %390 = vmatprep.subr.bf16.mxu0 %v316
        %391 = vmatpush1.bf16.msra.mxu0 %v315
        %392 = vmatprep.subr.bf16.mxu0 %v314
        %393 = vmatpush1.bf16.msra.mxu0 %v313
        %394 = vmatprep.subr.bf16.mxu0 0
        %395 = vmatpush2.bf16.msra.mxu0 0
        %396 = vmatprep.subr.bf16.mxu0 0
        %397 = vmatpush2.bf16.msra.mxu0 0
        %398 = vmatprep.subr.bf16.mxu0 0
        %399 = vmatpush2.bf16.msra.mxu0 0
        %400 = vmatprep.subr.bf16.mxu0 0
        %401 = vmatpush2.bf16.msra.mxu0 0
        %402 = vmatprep.subr.bf16.mxu0 0
        %403 = vmatpush2.bf16.msra.mxu0 0
        %404 = vmatprep.subr.bf16.mxu0 0
        %405 = vmatpush2.bf16.msra.mxu0 0
        %406 = vmatprep.subr.bf16.mxu0 0
        %407 = vmatpush2.bf16.msra.mxu0 0
        %408 = vmatprep.subr.bf16.mxu0 0
        %409 = vmatpush2.bf16.msra.mxu0 0
        %410 = vmatprep.mubr.bf16.mxu0 0
        %411 = vmatmul.mubr.bf16.gmra.mxu0 %v331
        %v412 = vpop.f32.mrf.mxu0
        %v413 = vadd.f32 0.0, %v412
        %v414 = vpop.f32.mrf.mxu0
        %v415 = vadd.f32 0.0, %v414
        %v416 = vpop.f32.mrf.mxu0
        %v417 = vadd.f32 0.0, %v416
        %v418 = vpop.f32.mrf.mxu0
        %v419 = vadd.f32 0.0, %v418
        %420 = vmatprep.mubr.bf16.mxu0 0
        %421 = vmatmul.mubr.bf16.gmra.mxu0 %v334
        %v422 = vpop.f32.mrf.mxu0
        %v423 = vadd.f32 0.0, %v422
        %v424 = vpop.f32.mrf.mxu0
        %v425 = vadd.f32 0.0, %v424
        %v426 = vpop.f32.mrf.mxu0
        %v427 = vadd.f32 0.0, %v426
        %v428 = vpop.f32.mrf.mxu0
        %v429 = vadd.f32 0.0, %v428
        %430 = vmatprep.mubr.bf16.mxu0 0
        %431 = vmatmul.mubr.bf16.gmra.mxu0 %v337
        %v432 = vpop.f32.mrf.mxu0
        %v433 = vadd.f32 0.0, %v432
        %v434 = vpop.f32.mrf.mxu0
        %v435 = vadd.f32 0.0, %v434
        %v436 = vpop.f32.mrf.mxu0
        %v437 = vadd.f32 0.0, %v436
        %v438 = vpop.f32.mrf.mxu0
        %v439 = vadd.f32 0.0, %v438
        %440 = vmatprep.mubr.bf16.mxu0 0
        %441 = vmatmul.mubr.bf16.gmra.mxu0 %v340
        %v442 = vpop.f32.mrf.mxu0
        %v443 = vadd.f32 0.0, %v442
        %v444 = vpop.f32.mrf.mxu0
        %v445 = vadd.f32 0.0, %v444
        %v446 = vpop.f32.mrf.mxu0
        %v447 = vadd.f32 0.0, %v446
        %v448 = vpop.f32.mrf.mxu0
        %v449 = vadd.f32 0.0, %v448
        %450 = vmatprep.mubr.bf16.mxu0 0
        %451 = vmatmul.mubr.bf16.gmra.mxu0 %v343
        %v452 = vpop.f32.mrf.mxu0
        %v453 = vadd.f32 0.0, %v452
        %v454 = vpop.f32.mrf.mxu0
        %v455 = vadd.f32 0.0, %v454
        %v456 = vpop.f32.mrf.mxu0
        %v457 = vadd.f32 0.0, %v456
        %v458 = vpop.f32.mrf.mxu0
        %v459 = vadd.f32 0.0, %v458
        %460 = vmatprep.mubr.bf16.mxu0 0
        %461 = vmatmul.mubr.bf16.gmra.mxu0 %v346
        %v462 = vpop.f32.mrf.mxu0
        %v463 = vadd.f32 0.0, %v462
        %v464 = vpop.f32.mrf.mxu0
        %v465 = vadd.f32 0.0, %v464
        %v466 = vpop.f32.mrf.mxu0
        %v467 = vadd.f32 0.0, %v466
        %v468 = vpop.f32.mrf.mxu0
        %v469 = vadd.f32 0.0, %v468
        %470 = vmatprep.mubr.bf16.mxu0 0
        %471 = vmatmul.mubr.bf16.gmra.mxu0 %v349
        %v472 = vpop.f32.mrf.mxu0
        %v473 = vadd.f32 0.0, %v472
        %v474 = vpop.f32.mrf.mxu0
        %v475 = vadd.f32 0.0, %v474
        %v476 = vpop.f32.mrf.mxu0
        %v477 = vadd.f32 0.0, %v476
        %v478 = vpop.f32.mrf.mxu0
        %v479 = vadd.f32 0.0, %v478
        %480 = vmatprep.mubr.bf16.mxu0 0
        %481 = vmatmul.mubr.bf16.gmra.mxu0 %v352
        %v482 = vpop.f32.mrf.mxu0
        %v483 = vadd.f32 0.0, %v482
        %v484 = vpop.f32.mrf.mxu0
        %v485 = vadd.f32 0.0, %v484
        %v486 = vpop.f32.mrf.mxu0
        %v487 = vadd.f32 0.0, %v486
        %v488 = vpop.f32.mrf.mxu0
        %v489 = vadd.f32 0.0, %v488
        %490 = vmatprep.mubr.bf16.mxu0 0
        %491 = vmatmul.mubr.bf16.gmra.mxu0 %v355
        %v492 = vpop.f32.mrf.mxu0
        %v493 = vadd.f32 0.0, %v492
        %v494 = vpop.f32.mrf.mxu0
        %v495 = vadd.f32 0.0, %v494
        %v496 = vpop.f32.mrf.mxu0
        %v497 = vadd.f32 0.0, %v496
        %v498 = vpop.f32.mrf.mxu0
        %v499 = vadd.f32 0.0, %v498
        %500 = vmatprep.mubr.bf16.mxu0 0
        %501 = vmatmul.mubr.bf16.gmra.mxu0 %v358
        %v502 = vpop.f32.mrf.mxu0
        %v503 = vadd.f32 0.0, %v502
        %v504 = vpop.f32.mrf.mxu0
        %v505 = vadd.f32 0.0, %v504
        %v506 = vpop.f32.mrf.mxu0
        %v507 = vadd.f32 0.0, %v506
        %v508 = vpop.f32.mrf.mxu0
        %v509 = vadd.f32 0.0, %v508
        %510 = vmatprep.mubr.bf16.mxu0 0
        %511 = vmatmul.mubr.bf16.gmra.mxu0 %v361
        %v512 = vpop.f32.mrf.mxu0
        %v513 = vadd.f32 0.0, %v512
        %v514 = vpop.f32.mrf.mxu0
        %v515 = vadd.f32 0.0, %v514
        %v516 = vpop.f32.mrf.mxu0
        %v517 = vadd.f32 0.0, %v516
        %v518 = vpop.f32.mrf.mxu0
        %v519 = vadd.f32 0.0, %v518
        %520 = vmatprep.mubr.bf16.mxu0 0
        %521 = vmatmul.mubr.bf16.gmra.mxu0 %v364
        %v522 = vpop.f32.mrf.mxu0
        %v523 = vadd.f32 0.0, %v522
        %v524 = vpop.f32.mrf.mxu0
        %v525 = vadd.f32 0.0, %v524
        %v526 = vpop.f32.mrf.mxu0
        %v527 = vadd.f32 0.0, %v526
        %v528 = vpop.f32.mrf.mxu0
        %v529 = vadd.f32 0.0, %v528
        %530 = vmatprep.mubr.bf16.mxu0 0
        %531 = vmatmul.mubr.bf16.gmra.mxu0 %v367
        %v532 = vpop.f32.mrf.mxu0
        %v533 = vadd.f32 0.0, %v532
        %v534 = vpop.f32.mrf.mxu0
        %v535 = vadd.f32 0.0, %v534
        %v536 = vpop.f32.mrf.mxu0
        %v537 = vadd.f32 0.0, %v536
        %v538 = vpop.f32.mrf.mxu0
        %v539 = vadd.f32 0.0, %v538
        %540 = vmatprep.mubr.bf16.mxu0 0
        %541 = vmatmul.mubr.bf16.gmra.mxu0 %v370
        %v542 = vpop.f32.mrf.mxu0
        %v543 = vadd.f32 0.0, %v542
        %v544 = vpop.f32.mrf.mxu0
        %v545 = vadd.f32 0.0, %v544
        %v546 = vpop.f32.mrf.mxu0
        %v547 = vadd.f32 0.0, %v546
        %v548 = vpop.f32.mrf.mxu0
        %v549 = vadd.f32 0.0, %v548
        %550 = vmatprep.mubr.bf16.mxu0 0
        %551 = vmatmul.mubr.bf16.gmra.mxu0 %v373
        %v552 = vpop.f32.mrf.mxu0
        %v553 = vadd.f32 0.0, %v552
        %v554 = vpop.f32.mrf.mxu0
        %v555 = vadd.f32 0.0, %v554
        %v556 = vpop.f32.mrf.mxu0
        %v557 = vadd.f32 0.0, %v556
        %v558 = vpop.f32.mrf.mxu0
        %v559 = vadd.f32 0.0, %v558
        %560 = vmatprep.mubr.bf16.mxu0 0
        %561 = vmatmul.mubr.bf16.gmra.mxu0 %v376
        %v562 = vpop.f32.mrf.mxu0
        %v563 = vadd.f32 0.0, %v562
        %v564 = vpop.f32.mrf.mxu0
        %v565 = vadd.f32 0.0, %v564
        %v566 = vpop.f32.mrf.mxu0
        %v567 = vadd.f32 0.0, %v566
        %v568 = vpop.f32.mrf.mxu0
        %v569 = vadd.f32 0.0, %v568
        %570 = vdwg.mxu0
        %v571 = vld [vmem:[%s2] sm:$0x3]
        %v572 = vmul.f32 %v413, 2.0
        %v573 = vmul.f32 %v415, 2.0
        %v574 = vmul.f32 %v417, 2.0
        %v575 = vmul.f32 %v419, 2.0
        %v576 = vmul.f32 %v423, 2.0
        %v577 = vmul.f32 %v425, 2.0
        %v578 = vmul.f32 %v427, 2.0
        %v579 = vmul.f32 %v429, 2.0
        %v580 = vmul.f32 %v433, 2.0
        %v581 = vmul.f32 %v435, 2.0
        %v582 = vmul.f32 %v437, 2.0
        %v583 = vmul.f32 %v439, 2.0
        %v584 = vmul.f32 %v443, 2.0
        %v585 = vmul.f32 %v445, 2.0
        %v586 = vmul.f32 %v447, 2.0
        %v587 = vmul.f32 %v449, 2.0
        %v588 = vmul.f32 %v453, 2.0
        %v589 = vmul.f32 %v455, 2.0
        %v590 = vmul.f32 %v457, 2.0
        %v591 = vmul.f32 %v459, 2.0
        %v592 = vmul.f32 %v463, 2.0
        %v593 = vmul.f32 %v465, 2.0
        %v594 = vmul.f32 %v467, 2.0
        %v595 = vmul.f32 %v469, 2.0
        %v596 = vmul.f32 %v473, 2.0
        %v597 = vmul.f32 %v475, 2.0
        %v598 = vmul.f32 %v477, 2.0
        %v599 = vmul.f32 %v479, 2.0
        %v600 = vmul.f32 %v483, 2.0
        %v601 = vmul.f32 %v485, 2.0
        %v602 = vmul.f32 %v487, 2.0
        %v603 = vmul.f32 %v489, 2.0
        %v604 = vmul.f32 %v493, 2.0
        %v605 = vmul.f32 %v495, 2.0
        %v606 = vmul.f32 %v497, 2.0
        %v607 = vmul.f32 %v499, 2.0
        %v608 = vmul.f32 %v503, 2.0
        %v609 = vmul.f32 %v505, 2.0
        %v610 = vmul.f32 %v507, 2.0
        %v611 = vmul.f32 %v509, 2.0
        %v612 = vmul.f32 %v513, 2.0
        %v613 = vmul.f32 %v515, 2.0
        %v614 = vmul.f32 %v517, 2.0
        %v615 = vmul.f32 %v519, 2.0
        %v616 = vmul.f32 %v523, 2.0
        %v617 = vmul.f32 %v525, 2.0
        %v618 = vmul.f32 %v527, 2.0
        %v619 = vmul.f32 %v529, 2.0
        %v620 = vmul.f32 %v533, 2.0
        %v621 = vmul.f32 %v535, 2.0
        %v622 = vmul.f32 %v537, 2.0
        %v623 = vmul.f32 %v539, 2.0
        %v624 = vmul.f32 %v543, 2.0
        %v625 = vmul.f32 %v545, 2.0
        %v626 = vmul.f32 %v547, 2.0
        %v627 = vmul.f32 %v549, 2.0
        %v628 = vmul.f32 %v553, 2.0
        %v629 = vmul.f32 %v555, 2.0
        %v630 = vmul.f32 %v557, 2.0
        %v631 = vmul.f32 %v559, 2.0
        %v632 = vmul.f32 %v563, 2.0
        %v633 = vmul.f32 %v565, 2.0
        %v634 = vmul.f32 %v567, 2.0
        %v635 = vmul.f32 %v569, 2.0
        %v637 = vlaneseq
        %v638 = vshrl.u32 %v637, 7
        %v639 = vsub.s32 0, %v638
        %v640 = vrot.slane %v571, %v639
        %v641 = vlaneseq
        %v642 = vshrl.u32 %v641, 7
        %v643 = vsub.s32 1, %v642
        %v644 = vrot.slane %v571, %v643
        %v647 = vsub.f32 %v640, %v572
        %v648 = vsub.f32 %v644, %v573
        %v649 = vsub.f32 %v640, %v574
        %v650 = vsub.f32 %v644, %v575
        %v651 = vsub.f32 %v640, %v576
        %v652 = vsub.f32 %v644, %v577
        %v653 = vsub.f32 %v640, %v578
        %v654 = vsub.f32 %v644, %v579
        %v655 = vsub.f32 %v640, %v580
        %v656 = vsub.f32 %v644, %v581
        %v657 = vsub.f32 %v640, %v582
        %v658 = vsub.f32 %v644, %v583
        %v659 = vsub.f32 %v640, %v584
        %v660 = vsub.f32 %v644, %v585
        %v661 = vsub.f32 %v640, %v586
        %v662 = vsub.f32 %v644, %v587
        %v663 = vsub.f32 %v640, %v588
        %v664 = vsub.f32 %v644, %v589
        %v665 = vsub.f32 %v640, %v590
        %v666 = vsub.f32 %v644, %v591
        %v667 = vsub.f32 %v640, %v592
        %v668 = vsub.f32 %v644, %v593
        %v669 = vsub.f32 %v640, %v594
        %v670 = vsub.f32 %v644, %v595
        %v671 = vsub.f32 %v640, %v596
        %v672 = vsub.f32 %v644, %v597
        %v673 = vsub.f32 %v640, %v598
        %v674 = vsub.f32 %v644, %v599
        %v675 = vsub.f32 %v640, %v600
        %v676 = vsub.f32 %v644, %v601
        %v677 = vsub.f32 %v640, %v602
        %v678 = vsub.f32 %v644, %v603
        %v679 = vsub.f32 %v640, %v604
        %v680 = vsub.f32 %v644, %v605
        %v681 = vsub.f32 %v640, %v606
        %v682 = vsub.f32 %v644, %v607
        %v683 = vsub.f32 %v640, %v608
        %v684 = vsub.f32 %v644, %v609
        %v685 = vsub.f32 %v640, %v610
        %v686 = vsub.f32 %v644, %v611
        %v687 = vsub.f32 %v640, %v612
        %v688 = vsub.f32 %v644, %v613
        %v689 = vsub.f32 %v640, %v614
        %v690 = vsub.f32 %v644, %v615
        %v691 = vsub.f32 %v640, %v616
        %v692 = vsub.f32 %v644, %v617
        %v693 = vsub.f32 %v640, %v618
        %v694 = vsub.f32 %v644, %v619
        %v695 = vsub.f32 %v640, %v620
        %v696 = vsub.f32 %v644, %v621
        %v697 = vsub.f32 %v640, %v622
        %v698 = vsub.f32 %v644, %v623
        %v699 = vsub.f32 %v640, %v624
        %v700 = vsub.f32 %v644, %v625
        %v701 = vsub.f32 %v640, %v626
        %v702 = vsub.f32 %v644, %v627
        %v703 = vsub.f32 %v640, %v628
        %v704 = vsub.f32 %v644, %v629
        %v705 = vsub.f32 %v640, %v630
        %v706 = vsub.f32 %v644, %v631
        %v707 = vsub.f32 %v640, %v632
        %v708 = vsub.f32 %v644, %v633
        %v709 = vsub.f32 %v640, %v634
        %v710 = vsub.f32 %v644, %v635
        %v711 = vmin.f32 %v647, %v648
        %712 = vmin.xlane.f32.xlu0 %v711
        %v713 = vpop.xlane.xlu0 %712
        %v714 = vmin.f32 %v649, %v650
        %715 = vmin.xlane.f32.xlu0 %v714
        %v716 = vpop.xlane.xlu0 %715
        %v717 = vmin.f32 %v651, %v652
        %718 = vmin.xlane.f32.xlu0 %v717
        %v719 = vpop.xlane.xlu0 %718
        %v720 = vmin.f32 %v653, %v654
        %721 = vmin.xlane.f32.xlu0 %v720
        %v722 = vpop.xlane.xlu0 %721
        %v723 = vmin.f32 %v655, %v656
        %724 = vmin.xlane.f32.xlu0 %v723
        %v725 = vpop.xlane.xlu0 %724
        %v726 = vmin.f32 %v657, %v658
        %727 = vmin.xlane.f32.xlu0 %v726
        %v728 = vpop.xlane.xlu0 %727
        %v729 = vmin.f32 %v659, %v660
        %730 = vmin.xlane.f32.xlu0 %v729
        %v731 = vpop.xlane.xlu0 %730
        %v732 = vmin.f32 %v661, %v662
        %733 = vmin.xlane.f32.xlu0 %v732
        %v734 = vpop.xlane.xlu0 %733
        %v735 = vmin.f32 %v663, %v664
        %736 = vmin.xlane.f32.xlu0 %v735
        %v737 = vpop.xlane.xlu0 %736
        %v738 = vmin.f32 %v665, %v666
        %739 = vmin.xlane.f32.xlu0 %v738
        %v740 = vpop.xlane.xlu0 %739
        %v741 = vmin.f32 %v667, %v668
        %742 = vmin.xlane.f32.xlu0 %v741
        %v743 = vpop.xlane.xlu0 %742
        %v744 = vmin.f32 %v669, %v670
        %745 = vmin.xlane.f32.xlu0 %v744
        %v746 = vpop.xlane.xlu0 %745
        %v747 = vmin.f32 %v671, %v672
        %748 = vmin.xlane.f32.xlu0 %v747
        %v749 = vpop.xlane.xlu0 %748
        %v750 = vmin.f32 %v673, %v674
        %751 = vmin.xlane.f32.xlu0 %v750
        %v752 = vpop.xlane.xlu0 %751
        %v753 = vmin.f32 %v675, %v676
        %754 = vmin.xlane.f32.xlu0 %v753
        %v755 = vpop.xlane.xlu0 %754
        %v756 = vmin.f32 %v677, %v678
        %757 = vmin.xlane.f32.xlu0 %v756
        %v758 = vpop.xlane.xlu0 %757
        %v759 = vmin.f32 %v679, %v680
        %760 = vmin.xlane.f32.xlu0 %v759
        %v761 = vpop.xlane.xlu0 %760
        %v762 = vmin.f32 %v681, %v682
        %763 = vmin.xlane.f32.xlu0 %v762
        %v764 = vpop.xlane.xlu0 %763
        %v765 = vmin.f32 %v683, %v684
        %766 = vmin.xlane.f32.xlu0 %v765
        %v767 = vpop.xlane.xlu0 %766
        %v768 = vmin.f32 %v685, %v686
        %769 = vmin.xlane.f32.xlu0 %v768
        %v770 = vpop.xlane.xlu0 %769
        %v771 = vmin.f32 %v687, %v688
        %772 = vmin.xlane.f32.xlu0 %v771
        %v773 = vpop.xlane.xlu0 %772
        %v774 = vmin.f32 %v689, %v690
        %775 = vmin.xlane.f32.xlu0 %v774
        %v776 = vpop.xlane.xlu0 %775
        %v777 = vmin.f32 %v691, %v692
        %778 = vmin.xlane.f32.xlu0 %v777
        %v779 = vpop.xlane.xlu0 %778
        %v780 = vmin.f32 %v693, %v694
        %781 = vmin.xlane.f32.xlu0 %v780
        %v782 = vpop.xlane.xlu0 %781
        %v783 = vmin.f32 %v695, %v696
        %784 = vmin.xlane.f32.xlu0 %v783
        %v785 = vpop.xlane.xlu0 %784
        %v786 = vmin.f32 %v697, %v698
        %787 = vmin.xlane.f32.xlu0 %v786
        %v788 = vpop.xlane.xlu0 %787
        %v789 = vmin.f32 %v699, %v700
        %790 = vmin.xlane.f32.xlu0 %v789
        %v791 = vpop.xlane.xlu0 %790
        %v792 = vmin.f32 %v701, %v702
        %793 = vmin.xlane.f32.xlu0 %v792
        %v794 = vpop.xlane.xlu0 %793
        %v795 = vmin.f32 %v703, %v704
        %796 = vmin.xlane.f32.xlu0 %v795
        %v797 = vpop.xlane.xlu0 %796
        %v798 = vmin.f32 %v705, %v706
        %799 = vmin.xlane.f32.xlu0 %v798
        %v800 = vpop.xlane.xlu0 %799
        %v801 = vmin.f32 %v707, %v708
        %802 = vmin.xlane.f32.xlu0 %v801
        %v803 = vpop.xlane.xlu0 %802
        %v804 = vmin.f32 %v709, %v710
        %805 = vmin.xlane.f32.xlu0 %v804
        %v806 = vpop.xlane.xlu0 %805
        %v807 = vsub.f32 %v713, %v647
        %v808 = vsub.f32 %v713, %v648
        %v809 = vsub.f32 %v716, %v649
        %v810 = vsub.f32 %v716, %v650
        %v811 = vsub.f32 %v719, %v651
        %v812 = vsub.f32 %v719, %v652
        %v813 = vsub.f32 %v722, %v653
        %v814 = vsub.f32 %v722, %v654
        %v815 = vsub.f32 %v725, %v655
        %v816 = vsub.f32 %v725, %v656
        %v817 = vsub.f32 %v728, %v657
        %v818 = vsub.f32 %v728, %v658
        %v819 = vsub.f32 %v731, %v659
        %v820 = vsub.f32 %v731, %v660
        %v821 = vsub.f32 %v734, %v661
        %v822 = vsub.f32 %v734, %v662
        %v823 = vsub.f32 %v737, %v663
        %v824 = vsub.f32 %v737, %v664
        %v825 = vsub.f32 %v740, %v665
        %v826 = vsub.f32 %v740, %v666
        %v827 = vsub.f32 %v743, %v667
        %v828 = vsub.f32 %v743, %v668
        %v829 = vsub.f32 %v746, %v669
        %v830 = vsub.f32 %v746, %v670
        %v831 = vsub.f32 %v749, %v671
        %v832 = vsub.f32 %v749, %v672
        %v833 = vsub.f32 %v752, %v673
        %v834 = vsub.f32 %v752, %v674
        %v835 = vsub.f32 %v755, %v675
        %v836 = vsub.f32 %v755, %v676
        %v837 = vsub.f32 %v758, %v677
        %v838 = vsub.f32 %v758, %v678
        %v839 = vsub.f32 %v761, %v679
        %v840 = vsub.f32 %v761, %v680
        %v841 = vsub.f32 %v764, %v681
        %v842 = vsub.f32 %v764, %v682
        %v843 = vsub.f32 %v767, %v683
        %v844 = vsub.f32 %v767, %v684
        %v845 = vsub.f32 %v770, %v685
        %v846 = vsub.f32 %v770, %v686
        %v847 = vsub.f32 %v773, %v687
        %v848 = vsub.f32 %v773, %v688
        %v849 = vsub.f32 %v776, %v689
        %v850 = vsub.f32 %v776, %v690
        %v851 = vsub.f32 %v779, %v691
        %v852 = vsub.f32 %v779, %v692
        %v853 = vsub.f32 %v782, %v693
        %v854 = vsub.f32 %v782, %v694
        %v855 = vsub.f32 %v785, %v695
        %v856 = vsub.f32 %v785, %v696
        %v857 = vsub.f32 %v788, %v697
        %v858 = vsub.f32 %v788, %v698
        %v859 = vsub.f32 %v791, %v699
        %v860 = vsub.f32 %v791, %v700
        %v861 = vsub.f32 %v794, %v701
        %v862 = vsub.f32 %v794, %v702
        %v863 = vsub.f32 %v797, %v703
        %v864 = vsub.f32 %v797, %v704
        %v865 = vsub.f32 %v800, %v705
        %v866 = vsub.f32 %v800, %v706
        %v867 = vsub.f32 %v803, %v707
        %v868 = vsub.f32 %v803, %v708
        %v869 = vsub.f32 %v806, %v709
        %v870 = vsub.f32 %v806, %v710
        %v871 = vmul.f32 %v807, 1.442695
        %v872 = vpow.pop %v871
        %v873 = vmul.f32 %v808, 1.442695
        %v874 = vpow.pop %v873
        %v875 = vmul.f32 %v809, 1.442695
        %v876 = vpow.pop %v875
        %v877 = vmul.f32 %v810, 1.442695
        %v878 = vpow.pop %v877
        %v879 = vmul.f32 %v811, 1.442695
        %v880 = vpow.pop %v879
        %v881 = vmul.f32 %v812, 1.442695
        %v882 = vpow.pop %v881
        %v883 = vmul.f32 %v813, 1.442695
        %v884 = vpow.pop %v883
        %v885 = vmul.f32 %v814, 1.442695
        %v886 = vpow.pop %v885
        %v887 = vmul.f32 %v815, 1.442695
        %v888 = vpow.pop %v887
        %v889 = vmul.f32 %v816, 1.442695
        %v890 = vpow.pop %v889
        %v891 = vmul.f32 %v817, 1.442695
        %v892 = vpow.pop %v891
        %v893 = vmul.f32 %v818, 1.442695
        %v894 = vpow.pop %v893
        %v895 = vmul.f32 %v819, 1.442695
        %v896 = vpow.pop %v895
        %v897 = vmul.f32 %v820, 1.442695
        %v898 = vpow.pop %v897
        %v899 = vmul.f32 %v821, 1.442695
        %v900 = vpow.pop %v899
        %v901 = vmul.f32 %v822, 1.442695
        %v902 = vpow.pop %v901
        %v903 = vmul.f32 %v823, 1.442695
        %v904 = vpow.pop %v903
        %v905 = vmul.f32 %v824, 1.442695
        %v906 = vpow.pop %v905
        %v907 = vmul.f32 %v825, 1.442695
        %v908 = vpow.pop %v907
        %v909 = vmul.f32 %v826, 1.442695
        %v910 = vpow.pop %v909
        %v911 = vmul.f32 %v827, 1.442695
        %v912 = vpow.pop %v911
        %v913 = vmul.f32 %v828, 1.442695
        %v914 = vpow.pop %v913
        %v915 = vmul.f32 %v829, 1.442695
        %v916 = vpow.pop %v915
        %v917 = vmul.f32 %v830, 1.442695
        %v918 = vpow.pop %v917
        %v919 = vmul.f32 %v831, 1.442695
        %v920 = vpow.pop %v919
        %v921 = vmul.f32 %v832, 1.442695
        %v922 = vpow.pop %v921
        %v923 = vmul.f32 %v833, 1.442695
        %v924 = vpow.pop %v923
        %v925 = vmul.f32 %v834, 1.442695
        %v926 = vpow.pop %v925
        %v927 = vmul.f32 %v835, 1.442695
        %v928 = vpow.pop %v927
        %v929 = vmul.f32 %v836, 1.442695
        %v930 = vpow.pop %v929
        %v931 = vmul.f32 %v837, 1.442695
        %v932 = vpow.pop %v931
        %v933 = vmul.f32 %v838, 1.442695
        %v934 = vpow.pop %v933
        %v935 = vmul.f32 %v839, 1.442695
        %v936 = vpow.pop %v935
        %v937 = vmul.f32 %v840, 1.442695
        %v938 = vpow.pop %v937
        %v939 = vmul.f32 %v841, 1.442695
        %v940 = vpow.pop %v939
        %v941 = vmul.f32 %v842, 1.442695
        %v942 = vpow.pop %v941
        %v943 = vmul.f32 %v843, 1.442695
        %v944 = vpow.pop %v943
        %v945 = vmul.f32 %v844, 1.442695
        %v946 = vpow.pop %v945
        %v947 = vmul.f32 %v845, 1.442695
        %v948 = vpow.pop %v947
        %v949 = vmul.f32 %v846, 1.442695
        %v950 = vpow.pop %v949
        %v951 = vmul.f32 %v847, 1.442695
        %v952 = vpow.pop %v951
        %v953 = vmul.f32 %v848, 1.442695
        %v954 = vpow.pop %v953
        %v955 = vmul.f32 %v849, 1.442695
        %v956 = vpow.pop %v955
        %v957 = vmul.f32 %v850, 1.442695
        %v958 = vpow.pop %v957
        %v959 = vmul.f32 %v851, 1.442695
        %v960 = vpow.pop %v959
        %v961 = vmul.f32 %v852, 1.442695
        %v962 = vpow.pop %v961
        %v963 = vmul.f32 %v853, 1.442695
        %v964 = vpow.pop %v963
        %v965 = vmul.f32 %v854, 1.442695
        %v966 = vpow.pop %v965
        %v967 = vmul.f32 %v855, 1.442695
        %v968 = vpow.pop %v967
        %v969 = vmul.f32 %v856, 1.442695
        %v970 = vpow.pop %v969
        %v971 = vmul.f32 %v857, 1.442695
        %v972 = vpow.pop %v971
        %v973 = vmul.f32 %v858, 1.442695
        %v974 = vpow.pop %v973
        %v975 = vmul.f32 %v859, 1.442695
        %v976 = vpow.pop %v975
        %v977 = vmul.f32 %v860, 1.442695
        %v978 = vpow.pop %v977
        %v979 = vmul.f32 %v861, 1.442695
        %v980 = vpow.pop %v979
        %v981 = vmul.f32 %v862, 1.442695
        %v982 = vpow.pop %v981
        %v983 = vmul.f32 %v863, 1.442695
        %v984 = vpow.pop %v983
        %v985 = vmul.f32 %v864, 1.442695
        %v986 = vpow.pop %v985
        %v987 = vmul.f32 %v865, 1.442695
        %v988 = vpow.pop %v987
        %v989 = vmul.f32 %v866, 1.442695
        %v990 = vpow.pop %v989
        %v991 = vmul.f32 %v867, 1.442695
        %v992 = vpow.pop %v991
        %v993 = vmul.f32 %v868, 1.442695
        %v994 = vpow.pop %v993
        %v995 = vmul.f32 %v869, 1.442695
        %v996 = vpow.pop %v995
        %v997 = vmul.f32 %v870, 1.442695
        %v998 = vpow.pop %v997
        %v999 = vadd.f32 %v872, %v874
        %1000 = vadd.xlane.f32.xlu0 %v999
        %v1001 = vpop.xlane.xlu0 %1000
        %v1002 = vadd.f32 %v876, %v878
        %1003 = vadd.xlane.f32.xlu0 %v1002
        %v1004 = vpop.xlane.xlu0 %1003
        %v1005 = vadd.f32 %v880, %v882
        %1006 = vadd.xlane.f32.xlu0 %v1005
        %v1007 = vpop.xlane.xlu0 %1006
        %v1008 = vadd.f32 %v884, %v886
        %1009 = vadd.xlane.f32.xlu0 %v1008
        %v1010 = vpop.xlane.xlu0 %1009
        %v1011 = vadd.f32 %v888, %v890
        %1012 = vadd.xlane.f32.xlu0 %v1011
        %v1013 = vpop.xlane.xlu0 %1012
        %v1014 = vadd.f32 %v892, %v894
        %1015 = vadd.xlane.f32.xlu0 %v1014
        %v1016 = vpop.xlane.xlu0 %1015
        %v1017 = vadd.f32 %v896, %v898
        %1018 = vadd.xlane.f32.xlu0 %v1017
        %v1019 = vpop.xlane.xlu0 %1018
        %v1020 = vadd.f32 %v900, %v902
        %1021 = vadd.xlane.f32.xlu0 %v1020
        %v1022 = vpop.xlane.xlu0 %1021
        %v1023 = vadd.f32 %v904, %v906
        %1024 = vadd.xlane.f32.xlu0 %v1023
        %v1025 = vpop.xlane.xlu0 %1024
        %v1026 = vadd.f32 %v908, %v910
        %1027 = vadd.xlane.f32.xlu0 %v1026
        %v1028 = vpop.xlane.xlu0 %1027
        %v1029 = vadd.f32 %v912, %v914
        %1030 = vadd.xlane.f32.xlu0 %v1029
        %v1031 = vpop.xlane.xlu0 %1030
        %v1032 = vadd.f32 %v916, %v918
        %1033 = vadd.xlane.f32.xlu0 %v1032
        %v1034 = vpop.xlane.xlu0 %1033
        %v1035 = vadd.f32 %v920, %v922
        %1036 = vadd.xlane.f32.xlu0 %v1035
        %v1037 = vpop.xlane.xlu0 %1036
        %v1038 = vadd.f32 %v924, %v926
        %1039 = vadd.xlane.f32.xlu0 %v1038
        %v1040 = vpop.xlane.xlu0 %1039
        %v1041 = vadd.f32 %v928, %v930
        %1042 = vadd.xlane.f32.xlu0 %v1041
        %v1043 = vpop.xlane.xlu0 %1042
        %v1044 = vadd.f32 %v932, %v934
        %1045 = vadd.xlane.f32.xlu0 %v1044
        %v1046 = vpop.xlane.xlu0 %1045
        %v1047 = vadd.f32 %v936, %v938
        %1048 = vadd.xlane.f32.xlu0 %v1047
        %v1049 = vpop.xlane.xlu0 %1048
        %v1050 = vadd.f32 %v940, %v942
        %1051 = vadd.xlane.f32.xlu0 %v1050
        %v1052 = vpop.xlane.xlu0 %1051
        %v1053 = vadd.f32 %v944, %v946
        %1054 = vadd.xlane.f32.xlu0 %v1053
        %v1055 = vpop.xlane.xlu0 %1054
        %v1056 = vadd.f32 %v948, %v950
        %1057 = vadd.xlane.f32.xlu0 %v1056
        %v1058 = vpop.xlane.xlu0 %1057
        %v1059 = vadd.f32 %v952, %v954
        %1060 = vadd.xlane.f32.xlu0 %v1059
        %v1061 = vpop.xlane.xlu0 %1060
        %v1062 = vadd.f32 %v956, %v958
        %1063 = vadd.xlane.f32.xlu0 %v1062
        %v1064 = vpop.xlane.xlu0 %1063
        %v1065 = vadd.f32 %v960, %v962
        %1066 = vadd.xlane.f32.xlu0 %v1065
        %v1067 = vpop.xlane.xlu0 %1066
        %v1068 = vadd.f32 %v964, %v966
        %1069 = vadd.xlane.f32.xlu0 %v1068
        %v1070 = vpop.xlane.xlu0 %1069
        %v1071 = vadd.f32 %v968, %v970
        %1072 = vadd.xlane.f32.xlu0 %v1071
        %v1073 = vpop.xlane.xlu0 %1072
        %v1074 = vadd.f32 %v972, %v974
        %1075 = vadd.xlane.f32.xlu0 %v1074
        %v1076 = vpop.xlane.xlu0 %1075
        %v1077 = vadd.f32 %v976, %v978
        %1078 = vadd.xlane.f32.xlu0 %v1077
        %v1079 = vpop.xlane.xlu0 %1078
        %v1080 = vadd.f32 %v980, %v982
        %1081 = vadd.xlane.f32.xlu0 %v1080
        %v1082 = vpop.xlane.xlu0 %1081
        %v1083 = vadd.f32 %v984, %v986
        %1084 = vadd.xlane.f32.xlu0 %v1083
        %v1085 = vpop.xlane.xlu0 %1084
        %v1086 = vadd.f32 %v988, %v990
        %1087 = vadd.xlane.f32.xlu0 %v1086
        %v1088 = vpop.xlane.xlu0 %1087
        %v1089 = vadd.f32 %v992, %v994
        %1090 = vadd.xlane.f32.xlu0 %v1089
        %v1091 = vpop.xlane.xlu0 %1090
        %v1092 = vadd.f32 %v996, %v998
        %1093 = vadd.xlane.f32.xlu0 %v1092
        %v1094 = vpop.xlane.xlu0 %1093
        %v1095 = vrcp.pop %v1001
        %v1096 = vmul.f32 %v872, %v1095
        %v1097 = vmul.f32 %v874, %v1095
        %v1098 = vrcp.pop %v1004
        %v1099 = vmul.f32 %v876, %v1098
        %v1100 = vmul.f32 %v878, %v1098
        %v1101 = vrcp.pop %v1007
        %v1102 = vmul.f32 %v880, %v1101
        %v1103 = vmul.f32 %v882, %v1101
        %v1104 = vrcp.pop %v1010
        %v1105 = vmul.f32 %v884, %v1104
        %v1106 = vmul.f32 %v886, %v1104
        %v1107 = vrcp.pop %v1013
        %v1108 = vmul.f32 %v888, %v1107
        %v1109 = vmul.f32 %v890, %v1107
        %v1110 = vrcp.pop %v1016
        %v1111 = vmul.f32 %v892, %v1110
        %v1112 = vmul.f32 %v894, %v1110
        %v1113 = vrcp.pop %v1019
        %v1114 = vmul.f32 %v896, %v1113
        %v1115 = vmul.f32 %v898, %v1113
        %v1116 = vrcp.pop %v1022
        %v1117 = vmul.f32 %v900, %v1116
        %v1118 = vmul.f32 %v902, %v1116
        %v1119 = vrcp.pop %v1025
        %v1120 = vmul.f32 %v904, %v1119
        %v1121 = vmul.f32 %v906, %v1119
        %v1122 = vrcp.pop %v1028
        %v1123 = vmul.f32 %v908, %v1122
        %v1124 = vmul.f32 %v910, %v1122
        %v1125 = vrcp.pop %v1031
        %v1126 = vmul.f32 %v912, %v1125
        %v1127 = vmul.f32 %v914, %v1125
        %v1128 = vrcp.pop %v1034
        %v1129 = vmul.f32 %v916, %v1128
        %v1130 = vmul.f32 %v918, %v1128
        %v1131 = vrcp.pop %v1037
        %v1132 = vmul.f32 %v920, %v1131
        %v1133 = vmul.f32 %v922, %v1131
        %v1134 = vrcp.pop %v1040
        %v1135 = vmul.f32 %v924, %v1134
        %v1136 = vmul.f32 %v926, %v1134
        %v1137 = vrcp.pop %v1043
        %v1138 = vmul.f32 %v928, %v1137
        %v1139 = vmul.f32 %v930, %v1137
        %v1140 = vrcp.pop %v1046
        %v1141 = vmul.f32 %v932, %v1140
        %v1142 = vmul.f32 %v934, %v1140
        %v1143 = vrcp.pop %v1049
        %v1144 = vmul.f32 %v936, %v1143
        %v1145 = vmul.f32 %v938, %v1143
        %v1146 = vrcp.pop %v1052
        %v1147 = vmul.f32 %v940, %v1146
        %v1148 = vmul.f32 %v942, %v1146
        %v1149 = vrcp.pop %v1055
        %v1150 = vmul.f32 %v944, %v1149
        %v1151 = vmul.f32 %v946, %v1149
        %v1152 = vrcp.pop %v1058
        %v1153 = vmul.f32 %v948, %v1152
        %v1154 = vmul.f32 %v950, %v1152
        %v1155 = vrcp.pop %v1061
        %v1156 = vmul.f32 %v952, %v1155
        %v1157 = vmul.f32 %v954, %v1155
        %v1158 = vrcp.pop %v1064
        %v1159 = vmul.f32 %v956, %v1158
        %v1160 = vmul.f32 %v958, %v1158
        %v1161 = vrcp.pop %v1067
        %v1162 = vmul.f32 %v960, %v1161
        %v1163 = vmul.f32 %v962, %v1161
        %v1164 = vrcp.pop %v1070
        %v1165 = vmul.f32 %v964, %v1164
        %v1166 = vmul.f32 %v966, %v1164
        %v1167 = vrcp.pop %v1073
        %v1168 = vmul.f32 %v968, %v1167
        %v1169 = vmul.f32 %v970, %v1167
        %v1170 = vrcp.pop %v1076
        %v1171 = vmul.f32 %v972, %v1170
        %v1172 = vmul.f32 %v974, %v1170
        %v1173 = vrcp.pop %v1079
        %v1174 = vmul.f32 %v976, %v1173
        %v1175 = vmul.f32 %v978, %v1173
        %v1176 = vrcp.pop %v1082
        %v1177 = vmul.f32 %v980, %v1176
        %v1178 = vmul.f32 %v982, %v1176
        %v1179 = vrcp.pop %v1085
        %v1180 = vmul.f32 %v984, %v1179
        %v1181 = vmul.f32 %v986, %v1179
        %v1182 = vrcp.pop %v1088
        %v1183 = vmul.f32 %v988, %v1182
        %v1184 = vmul.f32 %v990, %v1182
        %v1185 = vrcp.pop %v1091
        %v1186 = vmul.f32 %v992, %v1185
        %v1187 = vmul.f32 %v994, %v1185
        %v1188 = vrcp.pop %v1094
        %v1189 = vmul.f32 %v996, %v1188
        %v1190 = vmul.f32 %v998, %v1188
        %1191 = vst [vmem:[%s221] sm:$0xff] %v1096
        %1192 = vst [vmem:[%s221 + $0x8] sm:$0xff] %v1097
        %1193 = vst [vmem:[%s221 + $0x10] sm:$0xff] %v1099
        %1194 = vst [vmem:[%s221 + $0x18] sm:$0xff] %v1100
        %1195 = vst [vmem:[%s221 + $0x20] sm:$0xff] %v1102
        %1196 = vst [vmem:[%s221 + $0x28] sm:$0xff] %v1103
        %1197 = vst [vmem:[%s221 + $0x30] sm:$0xff] %v1105
        %1198 = vst [vmem:[%s221 + $0x38] sm:$0xff] %v1106
        %1199 = vst [vmem:[%s221 + $0x40] sm:$0xff] %v1108
        %1200 = vst [vmem:[%s221 + $0x48] sm:$0xff] %v1109
        %1201 = vst [vmem:[%s221 + $0x50] sm:$0xff] %v1111
        %1202 = vst [vmem:[%s221 + $0x58] sm:$0xff] %v1112
        %1203 = vst [vmem:[%s221 + $0x60] sm:$0xff] %v1114
        %1204 = vst [vmem:[%s221 + $0x68] sm:$0xff] %v1115
        %1205 = vst [vmem:[%s221 + $0x70] sm:$0xff] %v1117
        %1206 = vst [vmem:[%s221 + $0x78] sm:$0xff] %v1118
        %1207 = vst [vmem:[%s221 + $0x80] sm:$0xff] %v1120
        %1208 = vst [vmem:[%s221 + $0x88] sm:$0xff] %v1121
        %1209 = vst [vmem:[%s221 + $0x90] sm:$0xff] %v1123
        %1210 = vst [vmem:[%s221 + $0x98] sm:$0xff] %v1124
        %1211 = vst [vmem:[%s221 + $0xa0] sm:$0xff] %v1126
        %1212 = vst [vmem:[%s221 + $0xa8] sm:$0xff] %v1127
        %1213 = vst [vmem:[%s221 + $0xb0] sm:$0xff] %v1129
        %1214 = vst [vmem:[%s221 + $0xb8] sm:$0xff] %v1130
        %1215 = vst [vmem:[%s221 + $0xc0] sm:$0xff] %v1132
        %1216 = vst [vmem:[%s221 + $0xc8] sm:$0xff] %v1133
        %1217 = vst [vmem:[%s221 + $0xd0] sm:$0xff] %v1135
        %1218 = vst [vmem:[%s221 + $0xd8] sm:$0xff] %v1136
        %1219 = vst [vmem:[%s221 + $0xe0] sm:$0xff] %v1138
        %1220 = vst [vmem:[%s221 + $0xe8] sm:$0xff] %v1139
        %1221 = vst [vmem:[%s221 + $0xf0] sm:$0xff] %v1141
        %1222 = vst [vmem:[%s221 + $0xf8] sm:$0xff] %v1142
        %1223 = vst [vmem:[%s221 + $0x100] sm:$0xff] %v1144
        %1224 = vst [vmem:[%s221 + $0x108] sm:$0xff] %v1145
        %1225 = vst [vmem:[%s221 + $0x110] sm:$0xff] %v1147
        %1226 = vst [vmem:[%s221 + $0x118] sm:$0xff] %v1148
        %1227 = vst [vmem:[%s221 + $0x120] sm:$0xff] %v1150
        %1228 = vst [vmem:[%s221 + $0x128] sm:$0xff] %v1151
        %1229 = vst [vmem:[%s221 + $0x130] sm:$0xff] %v1153
        %1230 = vst [vmem:[%s221 + $0x138] sm:$0xff] %v1154
        %1231 = vst [vmem:[%s221 + $0x140] sm:$0xff] %v1156
        %1232 = vst [vmem:[%s221 + $0x148] sm:$0xff] %v1157
        %1233 = vst [vmem:[%s221 + $0x150] sm:$0xff] %v1159
        %1234 = vst [vmem:[%s221 + $0x158] sm:$0xff] %v1160
        %1235 = vst [vmem:[%s221 + $0x160] sm:$0xff] %v1162
        %1236 = vst [vmem:[%s221 + $0x168] sm:$0xff] %v1163
        %1237 = vst [vmem:[%s221 + $0x170] sm:$0xff] %v1165
        %1238 = vst [vmem:[%s221 + $0x178] sm:$0xff] %v1166
        %1239 = vst [vmem:[%s221 + $0x180] sm:$0xff] %v1168
        %1240 = vst [vmem:[%s221 + $0x188] sm:$0xff] %v1169
        %1241 = vst [vmem:[%s221 + $0x190] sm:$0xff] %v1171
        %1242 = vst [vmem:[%s221 + $0x198] sm:$0xff] %v1172
        %1243 = vst [vmem:[%s221 + $0x1a0] sm:$0xff] %v1174
        %1244 = vst [vmem:[%s221 + $0x1a8] sm:$0xff] %v1175
        %1245 = vst [vmem:[%s221 + $0x1b0] sm:$0xff] %v1177
        %1246 = vst [vmem:[%s221 + $0x1b8] sm:$0xff] %v1178
        %1247 = vst [vmem:[%s221 + $0x1c0] sm:$0xff] %v1180
        %1248 = vst [vmem:[%s221 + $0x1c8] sm:$0xff] %v1181
        %1249 = vst [vmem:[%s221 + $0x1d0] sm:$0xff] %v1183
        %1250 = vst [vmem:[%s221 + $0x1d8] sm:$0xff] %v1184
        %1251 = vst [vmem:[%s221 + $0x1e0] sm:$0xff] %v1186
        %1252 = vst [vmem:[%s221 + $0x1e8] sm:$0xff] %v1187
        %1253 = vst [vmem:[%s221 + $0x1f0] sm:$0xff] %v1189
        %1254 = vst [vmem:[%s221 + $0x1f8] sm:$0xff] %v1190
        %s1255 = sand.u32 %s113, 1
        %s1256 = scalar_lea.sflag [#allocation4], %s1255
        %s1257 = sand.u32 %s113, 1
        %s1258 = smul.addr %s1257, 512
        %s1259 = scalar_lea.vmem [#allocation7], %s1258
        // Predicated region
        $region41: #{tpu_custom_call.1} parent=31 // pred_check
          %p1260 = pneg %p123
        $region42: #{tpu_custom_call.1} parent=31 // pred_check_branch
          %1262 = sbr.rel (%p1260) target = $region44
        $region43: #{tpu_custom_call.1} parent=31 // pred_region
          %s1263 = smul.u32 32, %s26
          %s1265 = ssub.s32 8192, 8192
          %1266 = vsyncadd %s1256, %s1265
          %s1267 = smul.addr %s1263, 2
          %s1268 = smul.addr %s25, 64
          %s1269 = sadd.s32 %s1267, %s1268
          %s1270 = smul.addr %s1269, 128
          %s1271 = scalar_lea.hbm %s3, %s1270
          %s1272 = sshll.u32 %s1259, 4
          %s1273 = int_to_ptr.vmem [resolvable:$true] %s1272
          %1278 = dma.vmem_to_hbm [thread:$0]  %s1273, 8192, %s1271, %s1256, 256, 256, 16
        $region44: #{tpu_custom_call.1} parent=31 // pred_fallthru
          _
      $region32: #{tpu_custom_call.1} parent=5 // pred_fallthru
        _
      %p1279 = scmp.le.s32.totalorder 2, %s16
      // Predicated region
      $region45: #{tpu_custom_call.1} parent=5 // pred_check
        %p1280 = pneg %p1279
      $region46: #{tpu_custom_call.1} parent=5 // pred_check_branch
        %1282 = sbr.rel (%p1280) target = $region48
      $region47: #{tpu_custom_call.1} parent=5 // pred_region
        %s1283 = ssub.s32 %s16, 2
        // Predicated region
        $region49: #{tpu_custom_call.1} parent=47 // pred_check
          %p1284 = pneg %p129
        $region50: #{tpu_custom_call.1} parent=47 // pred_check_branch
          %1286 = sbr.rel (%p1284) target = $region52
        $region51: #{tpu_custom_call.1} parent=47 // pred_region
          %s1287 = sand.u32 %s114, 1
          %s1288 = scalar_lea.sflag [#allocation4], %s1287
          %s1289 = sand.u32 %s114, 1
          %s1290 = smul.addr %s1289, 512
          %s1291 = scalar_lea.vmem [#allocation7], %s1290
          %1292 = dma.done %s1288, 8192
        $region52: #{tpu_custom_call.1} parent=47 // pred_fallthru
          _
      $region48: #{tpu_custom_call.1} parent=5 // pred_fallthru
        _
    $region6: #{tpu_custom_call.1} parent=1 // loop_footer
      %s20 = sadd.s32 1, %s16
    $region7: #{tpu_custom_call.1} parent=1 // loop_footer_branch
      %15 = sbr.rel target = $region3
    $region8: #{tpu_custom_call.1} parent=1 // loop_exit
      _
    %1293 = vsyncpa [#allocation3], 1
    %s1294 = scalar_lea.sflag [#allocation3], 1
    %1295 = vsyncpa %s1294, 1
    %1296 = vsyncpa [#allocation6], 1
    %1297 = vsyncpa [#allocation4], 1
    %s1298 = scalar_lea.sflag [#allocation4], 1
    %1299 = vsyncpa %s1298, 1

</llo_original>
